<compile_context>
chip_gen: v6e
topology: v6e:2x2x1
jax: 0.10.0
libtpu: 0.0.40
codegen_flags: <defaults>
</compile_context>

<pallas_src>
import jax
import jax.numpy as jnp
from jax.experimental import pallas as pl
from jax.experimental.pallas import tpu as pltpu

MINPOS = -32
MAXPOS = 32
NBIN = abs(MINPOS) + MAXPOS + 1   # 65 bins (torch.bucketize over 64 boundaries)
NBIN_PAD = 128                    # zero-padded table rows -> lane-aligned MXU K


def _pe2d_kernel(idx_i_ref, idx_j_ref, x_ref, emb_hi_ref, emb_lo_ref, o_ref):
    # idx_i_ref/idx_j_ref:   (TR, 1) int32  -- idx[b, i] / idx[b, j] per pair-row
    # x_ref / o_ref:         (TR, D) x dtype
    # emb_hi_ref/emb_lo_ref: (NBIN_PAD, D) bf16, resident across the whole grid
    seqsep = idx_j_ref[...] - idx_i_ref[...]                       # (TR, 1)
    # torch.bucketize(seqsep, arange(minpos, maxpos)) with consecutive integer
    # boundaries == clip(seqsep - minpos, 0, nbin - 1).
    ib = jnp.clip(seqsep - MINPOS, 0, NBIN - 1)                    # (TR, 1)

    # Embedding gather as a one-hot matmul (two bf16 MXU passes, f32 accumulation).
    lane = jax.lax.broadcasted_iota(jnp.int32, (1, NBIN_PAD), 1)   # (1, 128)
    oh = (ib == lane).astype(jnp.bfloat16)                         # (TR, 128), 0/1 exact
    dn = (((1,), (0,)), ((), ()))
    emb = (jax.lax.dot_general(oh, emb_hi_ref[...], dn,
                               preferred_element_type=jnp.float32)
           + jax.lax.dot_general(oh, emb_lo_ref[...], dn,
                                 preferred_element_type=jnp.float32))   # (TR, D) f32

    o_ref[...] = (x_ref[...] + emb).astype(o_ref.dtype)


def _round_up(n, m):
    return ((n + m - 1) // m) * m


def _pick_block_rows(n_rows, d_model, itemsize, target_block_bytes=2 << 20):
    """Pair-rows per block (multiple of 8) so one x block is ~2 MiB."""
    tr = int(target_block_bytes // max(d_model * itemsize, 1))
    tr = max(8, (tr // 8) * 8)
    return min(tr, _round_up(n_rows, 8))


def positional_encoding_2d(x, idx, emb_table):
    """x: (B, L, L, D) float, idx: (B, L) int, emb_table: (NBIN, D) float32."""
    B, L, L2, D = x.shape
    assert L == L2, "x must be a square (B, L, L, D) pair map"
    assert emb_table.shape == (NBIN, D)

    idx = idx.astype(jnp.int32)
    n_rows = L * L
    x_flat = x.reshape(B, n_rows, D)            # contiguous collapse: free under jit

    # Flat per-pair residue indices: pair-row r = i*L + j  ->  i = r // L, j = r % L.
    idx_i_flat = jnp.repeat(idx, L, axis=1)     # (B, L*L): idx[b, i]
    idx_j_flat = jnp.tile(idx, (1, L))          # (B, L*L): idx[b, j]

    TR = _pick_block_rows(n_rows, D, x.dtype.itemsize)
    n_blocks = pl.cdiv(n_rows, TR)
    rows_pad = n_blocks * TR
    if rows_pad != n_rows:
        # Pad only the tiny idx vectors (never x); the last x/out block is a Pallas
        # partial block: OOB rows are discarded on writeback.
        pad = ((0, 0), (0, rows_pad - n_rows))
        idx_i_flat = jnp.pad(idx_i_flat, pad)
        idx_j_flat = jnp.pad(idx_j_flat, pad)
    idx_i_flat = idx_i_flat.reshape(B, rows_pad, 1)
    idx_j_flat = idx_j_flat.reshape(B, rows_pad, 1)

    # f32 table zero-padded 65 -> 128 rows (padded rows never selected), then split
    # into bf16 hi/lo halves summed in f32 inside the kernel.
    emb_pad = jnp.zeros((NBIN_PAD, D), jnp.float32).at[:NBIN].set(
        emb_table.astype(jnp.float32))
    emb_hi = emb_pad.astype(jnp.bfloat16)
    emb_lo = (emb_pad - emb_hi.astype(jnp.float32)).astype(jnp.bfloat16)

    cost = pl.CostEstimate(
        flops=2 * 2 * B * n_rows * NBIN_PAD * D,
        transcendentals=0,
        bytes_accessed=2 * B * n_rows * D * x.dtype.itemsize
        + 2 * B * rows_pad * 4 + 2 * NBIN_PAD * D * 2)

    out = pl.pallas_call(
        _pe2d_kernel,
        out_shape=jax.ShapeDtypeStruct((B, n_rows, D), x.dtype),
        grid_spec=pltpu.PrefetchScalarGridSpec(
            num_scalar_prefetch=0,
            grid=(n_blocks, B),                 # block axis leads: megacore-busy at B=1
            in_specs=[
                pl.BlockSpec((None, TR, 1), lambda r, b: (b, r, 0)),
                pl.BlockSpec((None, TR, 1), lambda r, b: (b, r, 0)),
                pl.BlockSpec((None, TR, D), lambda r, b: (b, r, 0)),
                pl.BlockSpec((NBIN_PAD, D), lambda r, b: (0, 0)),
                pl.BlockSpec((NBIN_PAD, D), lambda r, b: (0, 0)),
            ],
            out_specs=pl.BlockSpec((None, TR, D), lambda r, b: (b, r, 0)),
        ),
        compiler_params=pltpu.CompilerParams(
            dimension_semantics=("parallel", "parallel"),
            vmem_limit_bytes=32 << 20),
        input_output_aliases={2: 0},            # output aliases x: pure "add into x"
        cost_estimate=cost,
    )(idx_i_flat, idx_j_flat, x_flat, emb_hi, emb_lo)

    return out.reshape(B, L, L, D)


if __name__ == "__main__":
    B, L, D = 2, 8, 32

    key = jax.random.PRNGKey(0)
    k_emb, k_x = jax.random.split(key)

    # nn.Embedding(nbin, d_model) initializes N(0, 1) -- deterministic synthetic init.
    emb_table = jax.random.normal(k_emb, (NBIN, D), dtype=jnp.float32)
    x = jax.random.normal(k_x, (B, L, L, D), dtype=jnp.float32)
    # Residue indices, including a chain break and out-of-bin-range separations.
    idx = jnp.array([[0, 1, 2, 3, 40, 41, 42, 43],
                     [0, 2, 4, 6, 8, 10, 12, 14]], dtype=jnp.int32)

    # Pure-JAX reference (bucketize with consecutive integer boundaries == clipped
    # shift), computed before the kernel call since the kernel aliases x.
    seqsep = idx[:, None, :] - idx[:, :, None]
    ib_ref = jnp.clip(seqsep - MINPOS, 0, NBIN - 1)
    ref = jax.block_until_ready(x + jnp.take(emb_table, ib_ref, axis=0))

    out = jax.jit(positional_encoding_2d)(x, idx, emb_table)
    out = jax.block_until_ready(out)

    assert out.shape == (B, L, L, D)
    # hi/lo bf16 table split reconstructs the f32 table to <= 2^-16 relative error.
    assert jnp.allclose(out, ref, atol=1e-4, rtol=1e-5), "mismatch vs reference"
    print("KERNEL_OK")
</pallas_src>

<mosaic_0001>
module attributes {stable_mosaic.version = 11 : i64} {
  func.func @_pe2d_kernel(%arg0: i32, %arg1: i32, %arg2: memref<1x64x1xi32, #tpu.memory_space<vmem>>, %arg3: memref<1x64x1xi32, #tpu.memory_space<vmem>>, %arg4: memref<1x64x32xf32, #tpu.memory_space<vmem>>, %arg5: memref<128x32xbf16, #tpu.memory_space<vmem>>, %arg6: memref<128x32xbf16, #tpu.memory_space<vmem>>, %arg7: memref<1x64x32xf32, #tpu.memory_space<vmem>>) attributes {dimension_semantics = [#tpu.dimension_semantics<parallel>, #tpu.dimension_semantics<parallel>], iteration_bounds = array<i64: 1, 2>, scalar_prefetch = 0 : i64, scratch_operands = 0 : i64, tpu.core_type = #tpu.core_type<tc>, window_params = [{transform_indices = @transform_0, window_bounds = array<i64: 1, 64, 1>}, {transform_indices = @transform_1, window_bounds = array<i64: 1, 64, 1>}, {transform_indices = @transform_2, window_bounds = array<i64: 1, 64, 32>}, {pipeline_mode = #tpu.pipeline_mode<synchronous>, transform_indices = @transform_3, window_bounds = array<i64: 128, 32>}, {pipeline_mode = #tpu.pipeline_mode<synchronous>, transform_indices = @transform_4, window_bounds = array<i64: 128, 32>}, {transform_indices = @transform_5, window_bounds = array<i64: 1, 64, 32>}]} {
    %c0 = arith.constant 0 : index
    %c0_0 = arith.constant 0 : index
    %c0_1 = arith.constant 0 : index
    %0 = vector.load %arg3[%c0, %c0_0, %c0_1] : memref<1x64x1xi32, #tpu.memory_space<vmem>>, vector<1x64x1xi32>
    %1 = vector.shape_cast %0 : vector<1x64x1xi32> to vector<64x1xi32>
    %c0_2 = arith.constant 0 : index
    %c0_3 = arith.constant 0 : index
    %c0_4 = arith.constant 0 : index
    %2 = vector.load %arg2[%c0_2, %c0_3, %c0_4] : memref<1x64x1xi32, #tpu.memory_space<vmem>>, vector<1x64x1xi32>
    %3 = vector.shape_cast %2 : vector<1x64x1xi32> to vector<64x1xi32>
    %4 = arith.subi %1, %3 : vector<64x1xi32>
    %c-32_i32 = arith.constant -32 : i32
    %5 = vector.broadcast %c-32_i32 : i32 to vector<64x1xi32>
    %6 = arith.subi %4, %5 : vector<64x1xi32>
    %c0_i32 = arith.constant 0 : i32
    %c64_i32 = arith.constant 64 : i32
    %7 = vector.broadcast %c0_i32 : i32 to vector<64x1xi32>
    %8 = arith.maxsi %7, %6 : vector<64x1xi32>
    %9 = vector.broadcast %c64_i32 : i32 to vector<64x1xi32>
    %10 = arith.minsi %9, %8 : vector<64x1xi32>
    %11 = tpu.iota {dimensions = array<i32: 1>} : vector<1x128xi32>
    %12 = vector.broadcast %10 : vector<64x1xi32> to vector<64x128xi32>
    %13 = vector.broadcast %11 : vector<1x128xi32> to vector<64x128xi32>
    %14 = arith.cmpi eq, %12, %13 : vector<64x128xi32>
    %15 = arith.extui %14 : vector<64x128xi1> to vector<64x128xi32>
    %16 = arith.sitofp %15 : vector<64x128xi32> to vector<64x128xf32>
    %17 = arith.truncf %16 : vector<64x128xf32> to vector<64x128xbf16>
    %c0_5 = arith.constant 0 : index
    %c0_6 = arith.constant 0 : index
    %18 = vector.load %arg5[%c0_5, %c0_6] : memref<128x32xbf16, #tpu.memory_space<vmem>>, vector<128x32xbf16>
    %cst = arith.constant dense<0.000000e+00> : vector<64x32xf32>
    %19 = tpu.matmul %17, %18, %cst {dimension_numbers = #tpu.dot_dimension_numbers<[1], [0], [0], [1], [0, 0, 1, 1], [], []>} : vector<64x128xbf16>, vector<128x32xbf16>, vector<64x32xf32> -> vector<64x32xf32>
    %c0_7 = arith.constant 0 : index
    %c0_8 = arith.constant 0 : index
    %20 = vector.load %arg6[%c0_7, %c0_8] : memref<128x32xbf16, #tpu.memory_space<vmem>>, vector<128x32xbf16>
    %cst_9 = arith.constant dense<0.000000e+00> : vector<64x32xf32>
    %21 = tpu.matmul %17, %20, %cst_9 {dimension_numbers = #tpu.dot_dimension_numbers<[1], [0], [0], [1], [0, 0, 1, 1], [], []>} : vector<64x128xbf16>, vector<128x32xbf16>, vector<64x32xf32> -> vector<64x32xf32>
    %22 = arith.addf %19, %21 : vector<64x32xf32>
    %c0_10 = arith.constant 0 : index
    %c0_11 = arith.constant 0 : index
    %c0_12 = arith.constant 0 : index
    %23 = vector.load %arg4[%c0_10, %c0_11, %c0_12] : memref<1x64x32xf32, #tpu.memory_space<vmem>>, vector<1x64x32xf32>
    %24 = vector.shape_cast %23 : vector<1x64x32xf32> to vector<64x32xf32>
    %25 = arith.addf %24, %22 : vector<64x32xf32>
    %c0_13 = arith.constant 0 : index
    %c0_14 = arith.constant 0 : index
    %c0_15 = arith.constant 0 : index
    %26 = vector.load %arg7[%c0_13, %c0_14, %c0_15] : memref<1x64x32xf32, #tpu.memory_space<vmem>>, vector<1x64x32xf32>
    %27 = vector.shape_cast %26 : vector<1x64x32xf32> to vector<64x32xf32>
    %28 = vector.shape_cast %25 : vector<64x32xf32> to vector<1x64x32xf32>
    tpu.vector_store %arg7[%c0_13, %c0_14, %c0_15], %28 {strides = array<i32>} : memref<1x64x32xf32, #tpu.memory_space<vmem>>, vector<1x64x32xf32>,
    return
  }
  func.func @transform_0(%arg0: i32, %arg1: i32) -> (i32, i32, i32) {
    %c0_i32 = arith.constant 0 : i32
    %c0_i32_0 = arith.constant 0 : i32
    return %arg1, %arg0, %c0_i32 : i32, i32, i32
  }
  func.func @transform_1(%arg0: i32, %arg1: i32) -> (i32, i32, i32) {
    %c0_i32 = arith.constant 0 : i32
    %c0_i32_0 = arith.constant 0 : i32
    return %arg1, %arg0, %c0_i32 : i32, i32, i32
  }
  func.func @transform_2(%arg0: i32, %arg1: i32) -> (i32, i32, i32) {
    %c0_i32 = arith.constant 0 : i32
    %c0_i32_0 = arith.constant 0 : i32
    return %arg1, %arg0, %c0_i32 : i32, i32, i32
  }
  func.func @transform_3(%arg0: i32, %arg1: i32) -> (i32, i32) {
    %c0_i32 = arith.constant 0 : i32
    %c0_i32_0 = arith.constant 0 : i32
    %c0_i32_1 = arith.constant 0 : i32
    return %c0_i32, %c0_i32_0 : i32, i32
  }
  func.func @transform_4(%arg0: i32, %arg1: i32) -> (i32, i32) {
    %c0_i32 = arith.constant 0 : i32
    %c0_i32_0 = arith.constant 0 : i32
    %c0_i32_1 = arith.constant 0 : i32
    return %c0_i32, %c0_i32_0 : i32, i32
  }
  func.func @transform_5(%arg0: i32, %arg1: i32) -> (i32, i32, i32) {
    %c0_i32 = arith.constant 0 : i32
    %c0_i32_0 = arith.constant 0 : i32
    return %arg1, %arg0, %c0_i32 : i32, i32, i32
  }
}

</mosaic_0001>

<llo_original>
// kernel: positional_encoding_2d.1
$region0: #{positional_encoding_2d.1}
  #allocation0 [shape = 'u32[]', space=smem, size = 0x4, offset = 0x4, fixed_abs, tag = 'smem constant byte address 0x4 - core index']
  #allocation1 [shape = 'u32[144,128]{1,0:T(1,128)}', space=vmem, size = 0x12000, scoped, tag = 'internal scratch']
  %s0 = inlined_call_operand.vmem [shape: s32[2,64,1], index: 0, kind: input, shape index: {}]
  %s1 = inlined_call_operand.vmem [shape: s32[2,64,1], index: 1, kind: input, shape index: {}]
  %s2 = inlined_call_operand.vmem [shape: f32[2,64,32], index: 2, kind: input, shape index: {}, may-alias: {2,5}]
  %s3 = inlined_call_operand.vmem [shape: bf16[128,32], index: 3, kind: input, shape index: {}]
  %s4 = inlined_call_operand.vmem [shape: bf16[128,32], index: 4, kind: input, shape index: {}]
  %s5 = inlined_call_operand.vmem [shape: f32[2,64,32], index: 5, kind: output, shape index: {}, may-alias: {2,5}]
  %s6 = sld [smem:[#allocation0]]
  $region53: #{positional_encoding_2d.1} parent=0
    _
  %s8 = ssub.s32 1, %s6
  %s9 = scalar_select 0, %s8, %s6
  loop: start=0, step=1, limit=4
  $region2: #{positional_encoding_2d.1} parent=0 // loop_pre_header
    _
  $region3: #{positional_encoding_2d.1} parent=0 // loop_header
    %s11 = sphi 0, %s15
    %p12 = scmp.ge.s32.totalorder %s11, 4
    %s18 = sphi 0, %s30
    %s19 = sphi 0, %s26
    %s20 = sphi 0, %s18
    %s21 = sphi 0, %s19
    %s22 = sphi 0, %s20
    %s23 = sphi 0, %s21
    %s35 = sphi 0, %s37
    %s38 = sphi 0, %s35
    %s39 = sphi 0, %s38
    %s55 = sphi 0, %s39
    %s63 = sphi 0, %s65
    %s66 = sphi 0, %s63
    %s67 = sphi 0, %s66
    %s83 = sphi 0, %s67
    %s91 = sphi 0, %s93
    %s94 = sphi 0, %s91
    %s95 = sphi 0, %s94
    %s111 = sphi 0, %s95
    %s115 = sphi 0, %s115
    %s117 = sphi 0, %s115
    %s118 = sphi 0, %s117
    %s132 = sphi 0, %s118
    %s136 = sphi 0, %s136
    %s138 = sphi 0, %s136
    %s139 = sphi 0, %s138
    %s153 = sphi 0, %s139
    %s161 = sphi 0, %s163
    %s164 = sphi 0, %s161
    %s165 = sphi 0, %s164
    %s181 = sphi 0, %s165
  $region4: #{positional_encoding_2d.1} parent=0 // loop_header_branch
    %14 = sbr.rel (%p12) target = $region8
  $region5: #{positional_encoding_2d.1} parent=0 // loop_body
    %s16 = ssub.s32 %s11, 1
    %s17 = ssub.s32 %s11, 2
    %s24 = sadd.s32 1, %s19
    %p25 = scmp.ge.s32.totalorder %s24, 2
    %s26 = scalar_select %p25, 0, %s24
    %s27 = sadd.s32 1, %s18
    %s28 = scalar_select %p25, %s27, %s18
    %p29 = scmp.ge.s32.totalorder %s28, 1
    %s30 = scalar_select %p29, 0, %s28
    %s31 = ssub.s32 %s19, %s26
    %s32 = ssub.s32 %s18, %s30
    %s33 = sor.u32 %s31, %s32
    %p34 = scmp.eq.s32.totalorder %s33, 0
    %s36 = sadd.s32 %s35, 1
    %s37 = scalar_select %p34, %s35, %s36
    %p40 = pneg %p34
    %p41 = scmp.eq.s32.totalorder %s11, 1
    %p42 = por %p40, %p41
    %p43 = scmp.ne.s32.totalorder %s35, %s38
    %p44 = scmp.eq.s32.totalorder %s11, 0
    %p45 = por %p43, %p44
    %p46 = scmp.ne.s32.totalorder %s35, %s38
    %p47 = scmp.eq.s32.totalorder %s16, 1
    %p48 = por %p46, %p47
    %p49 = scmp.ne.s32.totalorder %s38, %s39
    %p50 = scmp.eq.s32.totalorder %s16, 0
    %p51 = por %p49, %p50
    %p52 = scmp.ne.s32.totalorder %s38, %s39
    %p53 = scmp.eq.s32.totalorder %s17, 1
    %p54 = por %p52, %p53
    %p56 = scmp.ne.s32.totalorder %s39, %s55
    %p57 = scmp.eq.s32.totalorder %s17, 0
    %p58 = por %p56, %p57
    %s59 = ssub.s32 %s19, %s26
    %s60 = ssub.s32 %s18, %s30
    %s61 = sor.u32 %s59, %s60
    %p62 = scmp.eq.s32.totalorder %s61, 0
    %s64 = sadd.s32 %s63, 1
    %s65 = scalar_select %p62, %s63, %s64
    %p68 = pneg %p62
    %p69 = scmp.eq.s32.totalorder %s11, 1
    %p70 = por %p68, %p69
    %p71 = scmp.ne.s32.totalorder %s63, %s66
    %p72 = scmp.eq.s32.totalorder %s11, 0
    %p73 = por %p71, %p72
    %p74 = scmp.ne.s32.totalorder %s63, %s66
    %p75 = scmp.eq.s32.totalorder %s16, 1
    %p76 = por %p74, %p75
    %p77 = scmp.ne.s32.totalorder %s66, %s67
    %p78 = scmp.eq.s32.totalorder %s16, 0
    %p79 = por %p77, %p78
    %p80 = scmp.ne.s32.totalorder %s66, %s67
    %p81 = scmp.eq.s32.totalorder %s17, 1
    %p82 = por %p80, %p81
    %p84 = scmp.ne.s32.totalorder %s67, %s83
    %p85 = scmp.eq.s32.totalorder %s17, 0
    %p86 = por %p84, %p85
    %s87 = ssub.s32 %s19, %s26
    %s88 = ssub.s32 %s18, %s30
    %s89 = sor.u32 %s87, %s88
    %p90 = scmp.eq.s32.totalorder %s89, 0
    %s92 = sadd.s32 %s91, 1
    %s93 = scalar_select %p90, %s91, %s92
    %p96 = pneg %p90
    %p97 = scmp.eq.s32.totalorder %s11, 1
    %p98 = por %p96, %p97
    %p99 = scmp.ne.s32.totalorder %s91, %s94
    %p100 = scmp.eq.s32.totalorder %s11, 0
    %p101 = por %p99, %p100
    %p102 = scmp.ne.s32.totalorder %s91, %s94
    %p103 = scmp.eq.s32.totalorder %s16, 1
    %p104 = por %p102, %p103
    %p105 = scmp.ne.s32.totalorder %s94, %s95
    %p106 = scmp.eq.s32.totalorder %s16, 0
    %p107 = por %p105, %p106
    %p108 = scmp.ne.s32.totalorder %s94, %s95
    %p109 = scmp.eq.s32.totalorder %s17, 1
    %p110 = por %p108, %p109
    %p112 = scmp.ne.s32.totalorder %s95, %s111
    %p113 = scmp.eq.s32.totalorder %s17, 0
    %p114 = por %p112, %p113
    %s116 = sadd.s32 %s115, 1
    %p119 = scmp.eq.s32.totalorder %s11, 1
    %p120 = scmp.ne.s32.totalorder %s115, %s117
    %p121 = scmp.eq.s32.totalorder %s11, 0
    %p122 = por %p120, %p121
    %p123 = scmp.ne.s32.totalorder %s115, %s117
    %p124 = scmp.eq.s32.totalorder %s16, 1
    %p125 = por %p123, %p124
    %p126 = scmp.ne.s32.totalorder %s117, %s118
    %p127 = scmp.eq.s32.totalorder %s16, 0
    %p128 = por %p126, %p127
    %p129 = scmp.ne.s32.totalorder %s117, %s118
    %p130 = scmp.eq.s32.totalorder %s17, 1
    %p131 = por %p129, %p130
    %p133 = scmp.ne.s32.totalorder %s118, %s132
    %p134 = scmp.eq.s32.totalorder %s17, 0
    %p135 = por %p133, %p134
    %s137 = sadd.s32 %s136, 1
    %p140 = scmp.eq.s32.totalorder %s11, 1
    %p141 = scmp.ne.s32.totalorder %s136, %s138
    %p142 = scmp.eq.s32.totalorder %s11, 0
    %p143 = por %p141, %p142
    %p144 = scmp.ne.s32.totalorder %s136, %s138
    %p145 = scmp.eq.s32.totalorder %s16, 1
    %p146 = por %p144, %p145
    %p147 = scmp.ne.s32.totalorder %s138, %s139
    %p148 = scmp.eq.s32.totalorder %s16, 0
    %p149 = por %p147, %p148
    %p150 = scmp.ne.s32.totalorder %s138, %s139
    %p151 = scmp.eq.s32.totalorder %s17, 1
    %p152 = por %p150, %p151
    %p154 = scmp.ne.s32.totalorder %s139, %s153
    %p155 = scmp.eq.s32.totalorder %s17, 0
    %p156 = por %p154, %p155
    %s157 = ssub.s32 %s19, %s26
    %s158 = ssub.s32 %s18, %s30
    %s159 = sor.u32 %s157, %s158
    %p160 = scmp.eq.s32.totalorder %s159, 0
    %s162 = sadd.s32 %s161, 1
    %s163 = scalar_select %p160, %s161, %s162
    %p166 = pneg %p160
    %p167 = scmp.eq.s32.totalorder %s11, 1
    %p168 = por %p166, %p167
    %p169 = scmp.ne.s32.totalorder %s161, %s164
    %p170 = scmp.eq.s32.totalorder %s11, 0
    %p171 = por %p169, %p170
    %p172 = scmp.ne.s32.totalorder %s161, %s164
    %p173 = scmp.eq.s32.totalorder %s16, 1
    %p174 = por %p172, %p173
    %p175 = scmp.ne.s32.totalorder %s164, %s165
    %p176 = scmp.eq.s32.totalorder %s16, 0
    %p177 = por %p175, %p176
    %p178 = scmp.ne.s32.totalorder %s164, %s165
    %p179 = scmp.eq.s32.totalorder %s17, 1
    %p180 = por %p178, %p179
    %p182 = scmp.ne.s32.totalorder %s165, %s181
    %p183 = scmp.eq.s32.totalorder %s17, 0
    %p184 = por %p182, %p183
    %p185 = scmp.le.s32.totalorder 1, %s11
    %p186 = scmp.lt.s32.totalorder %s11, 3
    %p187 = pnand %p185, %p186
    %p188 = pneg %p187
    // Predicated region
    $region9: #{positional_encoding_2d.1} parent=5 // pred_check
      _
    $region10: #{positional_encoding_2d.1} parent=5 // pred_check_branch
      %190 = sbr.rel (%p187) target = $region12
    $region11: #{positional_encoding_2d.1} parent=5 // pred_region
      %s191 = ssub.s32 %s11, 1
      // Predicated region
      $region13: #{positional_encoding_2d.1} parent=11 // pred_check
        %p192 = pneg %p128
      $region14: #{positional_encoding_2d.1} parent=11 // pred_check_branch
        %194 = sbr.rel (%p192) target = $region16
      $region15: #{positional_encoding_2d.1} parent=11 // pred_region
        _
      $region16: #{positional_encoding_2d.1} parent=11 // pred_fallthru
        _
      // Predicated region
      $region17: #{positional_encoding_2d.1} parent=11 // pred_check
        %p195 = pneg %p149
      $region18: #{positional_encoding_2d.1} parent=11 // pred_check_branch
        %197 = sbr.rel (%p195) target = $region20
      $region19: #{positional_encoding_2d.1} parent=11 // pred_region
        _
      $region20: #{positional_encoding_2d.1} parent=11 // pred_fallthru
        _
    $region12: #{positional_encoding_2d.1} parent=5 // pred_fallthru
      _
    %p198 = scmp.lt.s32.totalorder %s11, 2
    // Predicated region
    $region21: #{positional_encoding_2d.1} parent=5 // pred_check
      %p199 = pneg %p198
    $region22: #{positional_encoding_2d.1} parent=5 // pred_check_branch
      %201 = sbr.rel (%p199) target = $region24
    $region23: #{positional_encoding_2d.1} parent=5 // pred_region
      // Predicated region
      $region25: #{positional_encoding_2d.1} parent=23 // pred_check
        %p202 = pneg %p45
      $region26: #{positional_encoding_2d.1} parent=23 // pred_check_branch
        %204 = sbr.rel (%p202) target = $region28
      $region27: #{positional_encoding_2d.1} parent=23 // pred_region
        %s205 = smul.u32 8, %s18
        %p206 = scmp.lt.s32.totalorder %s19, 1
        %s207 = scalar_select %p206, %s19, 1
        %p208 = scmp.lt.s32.totalorder %s205, 7
        %s209 = scalar_select %p208, %s205, 7
        %s210 = smul.addr %s207, 8
        %s211 = sadd.s32 %s209, %s210
        %s212 = smul.addr %s211, 8
        %s213 = scalar_lea.vmem %s0, %s212
        %s214 = smul.u32 8, %s18
      $region28: #{positional_encoding_2d.1} parent=23 // pred_fallthru
        _
      // Predicated region
      $region29: #{positional_encoding_2d.1} parent=23 // pred_check
        %p215 = pneg %p73
      $region30: #{positional_encoding_2d.1} parent=23 // pred_check_branch
        %217 = sbr.rel (%p215) target = $region32
      $region31: #{positional_encoding_2d.1} parent=23 // pred_region
        %s218 = smul.u32 8, %s18
        %p219 = scmp.lt.s32.totalorder %s19, 1
        %s220 = scalar_select %p219, %s19, 1
        %p221 = scmp.lt.s32.totalorder %s218, 7
        %s222 = scalar_select %p221, %s218, 7
        %s223 = smul.addr %s220, 8
        %s224 = sadd.s32 %s222, %s223
        %s225 = smul.addr %s224, 8
        %s226 = scalar_lea.vmem %s1, %s225
        %s227 = smul.u32 8, %s18
      $region32: #{positional_encoding_2d.1} parent=23 // pred_fallthru
        _
      // Predicated region
      $region33: #{positional_encoding_2d.1} parent=23 // pred_check
        %p228 = pneg %p101
      $region34: #{positional_encoding_2d.1} parent=23 // pred_check_branch
        %230 = sbr.rel (%p228) target = $region36
      $region35: #{positional_encoding_2d.1} parent=23 // pred_region
        %s231 = smul.u32 8, %s18
        %p232 = scmp.lt.s32.totalorder %s19, 1
        %s233 = scalar_select %p232, %s19, 1
        %p234 = scmp.lt.s32.totalorder %s231, 7
        %s235 = scalar_select %p234, %s231, 7
        %s236 = smul.addr %s233, 8
        %s237 = sadd.s32 %s235, %s236
        %s238 = smul.addr %s237, 8
        %s239 = scalar_lea.vmem %s2, %s238
        %s240 = smul.u32 8, %s18
      $region36: #{positional_encoding_2d.1} parent=23 // pred_fallthru
        _
    $region24: #{positional_encoding_2d.1} parent=5 // pred_fallthru
      _
    %p241 = scmp.le.s32.totalorder 1, %s11
    %p242 = scmp.lt.s32.totalorder %s11, 3
    %p243 = pnand %p241, %p242
    %p244 = pneg %p243
    // Predicated region
    $region37: #{positional_encoding_2d.1} parent=5 // pred_check
      _
    $region38: #{positional_encoding_2d.1} parent=5 // pred_check_branch
      %246 = sbr.rel (%p243) target = $region40
    $region39: #{positional_encoding_2d.1} parent=5 // pred_region
      %s247 = ssub.s32 %s11, 1
      %s248 = smul.u32 8, %s20
      %p249 = scmp.lt.s32.totalorder %s21, 1
      %s250 = scalar_select %p249, %s21, 1
      %p251 = scmp.lt.s32.totalorder %s248, 7
      %s252 = scalar_select %p251, %s248, 7
      %s253 = smul.addr %s250, 8
      %s254 = sadd.s32 %s252, %s253
      %s255 = smul.addr %s254, 8
      %s256 = scalar_lea.vmem %s0, %s255
      %p257 = pneg %p51
      %p258 = pneg %p48
      %s259 = smul.u32 8, %s20
      %p260 = scmp.lt.s32.totalorder %s21, 1
      %s261 = scalar_select %p260, %s21, 1
      %p262 = scmp.lt.s32.totalorder %s259, 7
      %s263 = scalar_select %p262, %s259, 7
      %s264 = smul.addr %s261, 8
      %s265 = sadd.s32 %s263, %s264
      %s266 = smul.addr %s265, 8
      %s267 = scalar_lea.vmem %s1, %s266
      %p268 = pneg %p79
      %p269 = pneg %p76
      %s270 = smul.u32 8, %s20
      %p271 = scmp.lt.s32.totalorder %s21, 1
      %s272 = scalar_select %p271, %s21, 1
      %p273 = scmp.lt.s32.totalorder %s270, 7
      %s274 = scalar_select %p273, %s270, 7
      %s275 = smul.addr %s272, 8
      %s276 = sadd.s32 %s274, %s275
      %s277 = smul.addr %s276, 8
      %s278 = scalar_lea.vmem %s2, %s277
      %p279 = pneg %p107
      %p280 = pneg %p104
      %p281 = pneg %p128
      %p282 = pneg %p125
      %p283 = pneg %p149
      %p284 = pneg %p146
      %p285 = pneg %p177
      %p286 = pneg %p174
      %s287 = smul.u32 8, %s20
      %p288 = scmp.lt.s32.totalorder %s21, 1
      %s289 = scalar_select %p288, %s21, 1
      %p290 = scmp.lt.s32.totalorder %s287, 7
      %s291 = scalar_select %p290, %s287, 7
      %s292 = smul.addr %s289, 8
      %s293 = sadd.s32 %s291, %s292
      %s294 = smul.addr %s293, 8
      %s295 = scalar_lea.vmem %s5, %s294
      %s296 = smul.u32 8, %s20
      %p297 = scmp.lt.s32.totalorder %s21, 1
      %s298 = scalar_select %p297, %s21, 1
      %p299 = scmp.lt.s32.totalorder %s296, 7
      %s300 = scalar_select %p299, %s296, 7
      %s301 = smul.addr %s298, 8
      %s302 = sadd.s32 %s300, %s301
      %s303 = smul.addr %s302, 8
      %s304 = scalar_lea.vmem %s0, %s303
      %s305 = smul.u32 8, %s20
      %s306 = smul.u32 8, %s20
      %p307 = scmp.lt.s32.totalorder %s21, 1
      %s308 = scalar_select %p307, %s21, 1
      %p309 = scmp.lt.s32.totalorder %s306, 7
      %s310 = scalar_select %p309, %s306, 7
      %s311 = smul.addr %s308, 8
      %s312 = sadd.s32 %s310, %s311
      %s313 = smul.addr %s312, 8
      %s314 = scalar_lea.vmem %s1, %s313
      %s315 = smul.u32 8, %s20
      %s316 = smul.u32 8, %s20
      %p317 = scmp.lt.s32.totalorder %s21, 1
      %s318 = scalar_select %p317, %s21, 1
      %p319 = scmp.lt.s32.totalorder %s316, 7
      %s320 = scalar_select %p319, %s316, 7
      %s321 = smul.addr %s318, 8
      %s322 = sadd.s32 %s320, %s321
      %s323 = smul.addr %s322, 8
      %s324 = scalar_lea.vmem %s2, %s323
      %s325 = smul.u32 8, %s20
      %s326 = smul.u32 8, %s20
      %p327 = scmp.lt.s32.totalorder %s21, 1
      %s328 = scalar_select %p327, %s21, 1
      %p329 = scmp.lt.s32.totalorder %s326, 7
      %s330 = scalar_select %p329, %s326, 7
      %s331 = smul.addr %s328, 8
      %s332 = sadd.s32 %s330, %s331
      %s333 = smul.addr %s332, 8
      %s334 = scalar_lea.vmem %s5, %s333
      %s335 = smul.u32 8, %s20
      %v337 = vld [vmem:[%s314] sm:$0xff]
      %v338 = vld [vmem:[%s314 + $0x8] sm:$0xff]
      %v339 = vld [vmem:[%s314 + $0x10] sm:$0xff]
      %v340 = vld [vmem:[%s314 + $0x18] sm:$0xff]
      %v341 = vld [vmem:[%s314 + $0x20] sm:$0xff]
      %v342 = vld [vmem:[%s314 + $0x28] sm:$0xff]
      %v343 = vld [vmem:[%s314 + $0x30] sm:$0xff]
      %v344 = vld [vmem:[%s314 + $0x38] sm:$0xff]
      %v345 = vld [vmem:[%s304] sm:$0xff]
      %v346 = vld [vmem:[%s304 + $0x8] sm:$0xff]
      %v347 = vld [vmem:[%s304 + $0x10] sm:$0xff]
      %v348 = vld [vmem:[%s304 + $0x18] sm:$0xff]
      %v349 = vld [vmem:[%s304 + $0x20] sm:$0xff]
      %v350 = vld [vmem:[%s304 + $0x28] sm:$0xff]
      %v351 = vld [vmem:[%s304 + $0x30] sm:$0xff]
      %v352 = vld [vmem:[%s304 + $0x38] sm:$0xff]
      %v353 = vsub.s32 %v337, %v345
      %v354 = vsub.s32 %v338, %v346
      %v355 = vsub.s32 %v339, %v347
      %v356 = vsub.s32 %v340, %v348
      %v357 = vsub.s32 %v341, %v349
      %v358 = vsub.s32 %v342, %v350
      %v359 = vsub.s32 %v343, %v351
      %v360 = vsub.s32 %v344, %v352
      %v361 = vsub.s32 %v353, 4294967264
      %v362 = vsub.s32 %v354, 4294967264
      %v363 = vsub.s32 %v355, 4294967264
      %v364 = vsub.s32 %v356, 4294967264
      %v365 = vsub.s32 %v357, 4294967264
      %v366 = vsub.s32 %v358, 4294967264
      %v367 = vsub.s32 %v359, 4294967264
      %v368 = vsub.s32 %v360, 4294967264
      %vm369 = vcmp.gt.s32.totalorder %v361, 0
      %v370 = vsel %vm369, %v361, 0
      %vm371 = vcmp.gt.s32.totalorder %v362, 0
      %v372 = vsel %vm371, %v362, 0
      %vm373 = vcmp.gt.s32.totalorder %v363, 0
      %v374 = vsel %vm373, %v363, 0
      %vm375 = vcmp.gt.s32.totalorder %v364, 0
      %v376 = vsel %vm375, %v364, 0
      %vm377 = vcmp.gt.s32.totalorder %v365, 0
      %v378 = vsel %vm377, %v365, 0
      %vm379 = vcmp.gt.s32.totalorder %v366, 0
      %v380 = vsel %vm379, %v366, 0
      %vm381 = vcmp.gt.s32.totalorder %v367, 0
      %v382 = vsel %vm381, %v367, 0
      %vm383 = vcmp.gt.s32.totalorder %v368, 0
      %v384 = vsel %vm383, %v368, 0
      %vm385 = vcmp.lt.s32.totalorder %v370, 64
      %v386 = vsel %vm385, %v370, 64
      %vm387 = vcmp.lt.s32.totalorder %v372, 64
      %v388 = vsel %vm387, %v372, 64
      %vm389 = vcmp.lt.s32.totalorder %v374, 64
      %v390 = vsel %vm389, %v374, 64
      %vm391 = vcmp.lt.s32.totalorder %v376, 64
      %v392 = vsel %vm391, %v376, 64
      %vm393 = vcmp.lt.s32.totalorder %v378, 64
      %v394 = vsel %vm393, %v378, 64
      %vm395 = vcmp.lt.s32.totalorder %v380, 64
      %v396 = vsel %vm395, %v380, 64
      %vm397 = vcmp.lt.s32.totalorder %v382, 64
      %v398 = vsel %vm397, %v382, 64
      %vm399 = vcmp.lt.s32.totalorder %v384, 64
      %v400 = vsel %vm399, %v384, 64
      %v401 = vlaneseq
      %v402 = vand.u32 %v401, 127
      %403 = vset.pattern.permute.xlu0 0
      %404 = vperm.xlu0 %403, %v386
      %v405 = vpop.permute.xlu0 %404
      %406 = vset.pattern.permute.xlu0 0
      %407 = vperm.xlu0 %406, %v388
      %v408 = vpop.permute.xlu0 %407
      %409 = vset.pattern.permute.xlu0 0
      %410 = vperm.xlu0 %409, %v390
      %v411 = vpop.permute.xlu0 %410
      %412 = vset.pattern.permute.xlu0 0
      %413 = vperm.xlu0 %412, %v392
      %v414 = vpop.permute.xlu0 %413
      %415 = vset.pattern.permute.xlu0 0
      %416 = vperm.xlu0 %415, %v394
      %v417 = vpop.permute.xlu0 %416
      %418 = vset.pattern.permute.xlu0 0
      %419 = vperm.xlu0 %418, %v396
      %v420 = vpop.permute.xlu0 %419
      %421 = vset.pattern.permute.xlu0 0
      %422 = vperm.xlu0 %421, %v398
      %v423 = vpop.permute.xlu0 %422
      %424 = vset.pattern.permute.xlu0 0
      %425 = vperm.xlu0 %424, %v400
      %v426 = vpop.permute.xlu0 %425
      %vm427 = vcmp.eq.s32.totalorder %v405, %v402
      %vm428 = vcmp.eq.s32.totalorder %v408, %v402
      %vm429 = vcmp.eq.s32.totalorder %v411, %v402
      %vm430 = vcmp.eq.s32.totalorder %v414, %v402
      %vm431 = vcmp.eq.s32.totalorder %v417, %v402
      %vm432 = vcmp.eq.s32.totalorder %v420, %v402
      %vm433 = vcmp.eq.s32.totalorder %v423, %v402
      %vm434 = vcmp.eq.s32.totalorder %v426, %v402
      %v435 = vsel %vm427, 1, 0
      %v436 = vsel %vm428, 1, 0
      %v437 = vsel %vm429, 1, 0
      %v438 = vsel %vm430, 1, 0
      %v439 = vsel %vm431, 1, 0
      %v440 = vsel %vm432, 1, 0
      %v441 = vsel %vm433, 1, 0
      %v442 = vsel %vm434, 1, 0
      %v443 = vcvt.s32.f32 %v435
      %v444 = vcvt.s32.f32 %v436
      %v445 = vcvt.s32.f32 %v437
      %v446 = vcvt.s32.f32 %v438
      %v447 = vcvt.s32.f32 %v439
      %v448 = vcvt.s32.f32 %v440
      %v449 = vcvt.s32.f32 %v441
      %v450 = vcvt.s32.f32 %v442
      %v451 = vpack.c.bf16 %v444, %v443
      %v452 = vpack.c.bf16 %v446, %v445
      %v453 = vpack.c.bf16 %v448, %v447
      %v454 = vpack.c.bf16 %v450, %v449
      %v455 = vld [vmem:[%s3] sm:$0xf]
      %v456 = vld [vmem:[%s3 + $0x4] sm:$0xf]
      %v457 = vld [vmem:[%s3 + $0x8] sm:$0xf]
      %v458 = vld [vmem:[%s3 + $0xc] sm:$0xf]
      %v459 = vld [vmem:[%s3 + $0x10] sm:$0xf]
      %v460 = vld [vmem:[%s3 + $0x14] sm:$0xf]
      %v461 = vld [vmem:[%s3 + $0x18] sm:$0xf]
      %v462 = vld [vmem:[%s3 + $0x1c] sm:$0xf]
      %v463 = vld [vmem:[%s3 + $0x20] sm:$0xf]
      %v464 = vld [vmem:[%s3 + $0x24] sm:$0xf]
      %v465 = vld [vmem:[%s3 + $0x28] sm:$0xf]
      %v466 = vld [vmem:[%s3 + $0x2c] sm:$0xf]
      %v467 = vld [vmem:[%s3 + $0x30] sm:$0xf]
      %v468 = vld [vmem:[%s3 + $0x34] sm:$0xf]
      %v469 = vld [vmem:[%s3 + $0x38] sm:$0xf]
      %v470 = vld [vmem:[%s3 + $0x3c] sm:$0xf]
      %v471 = vld [vmem:[%s4] sm:$0xf]
      %v472 = vld [vmem:[%s4 + $0x4] sm:$0xf]
      %v473 = vld [vmem:[%s4 + $0x8] sm:$0xf]
      %v474 = vld [vmem:[%s4 + $0xc] sm:$0xf]
      %v475 = vld [vmem:[%s4 + $0x10] sm:$0xf]
      %v476 = vld [vmem:[%s4 + $0x14] sm:$0xf]
      %v477 = vld [vmem:[%s4 + $0x18] sm:$0xf]
      %v478 = vld [vmem:[%s4 + $0x1c] sm:$0xf]
      %v479 = vld [vmem:[%s4 + $0x20] sm:$0xf]
      %v480 = vld [vmem:[%s4 + $0x24] sm:$0xf]
      %v481 = vld [vmem:[%s4 + $0x28] sm:$0xf]
      %v482 = vld [vmem:[%s4 + $0x2c] sm:$0xf]
      %v483 = vld [vmem:[%s4 + $0x30] sm:$0xf]
      %v484 = vld [vmem:[%s4 + $0x34] sm:$0xf]
      %v485 = vld [vmem:[%s4 + $0x38] sm:$0xf]
      %v486 = vld [vmem:[%s4 + $0x3c] sm:$0xf]
      %v503 = vunpack.c.l.b16 %v471
      %v504 = vunpack.c.l.b16 %v472
      %v505 = vunpack.c.l.b16 %v473
      %v506 = vunpack.c.l.b16 %v474
      %v507 = vunpack.c.l.b16 %v475
      %v508 = vunpack.c.l.b16 %v476
      %v509 = vunpack.c.l.b16 %v477
      %v510 = vunpack.c.l.b16 %v478
      %v511 = vunpack.c.l.b16 %v479
      %v512 = vunpack.c.l.b16 %v480
      %v513 = vunpack.c.l.b16 %v481
      %v514 = vunpack.c.l.b16 %v482
      %v515 = vunpack.c.l.b16 %v483
      %v516 = vunpack.c.l.b16 %v484
      %v517 = vunpack.c.l.b16 %v485
      %v518 = vunpack.c.l.b16 %v486
      %v519 = vpack.c.b16 %v504, %v503
      %v520 = vpack.c.b16 %v506, %v505
      %v521 = vpack.c.b16 %v508, %v507
      %v522 = vpack.c.b16 %v510, %v509
      %v523 = vpack.c.b16 %v512, %v511
      %v524 = vpack.c.b16 %v514, %v513
      %v525 = vpack.c.b16 %v516, %v515
      %v526 = vpack.c.b16 %v518, %v517
      %535 = vmatprep.subr.bf16.mxu0 0
      %536 = vmatpush1.bf16.msra.mxu0 %v526
      %537 = vmatprep.subr.bf16.mxu0 0
      %538 = vmatpush1.bf16.msra.mxu0 %v525
      %539 = vmatprep.subr.bf16.mxu0 0
      %540 = vmatpush1.bf16.msra.mxu0 %v524
      %541 = vmatprep.subr.bf16.mxu0 0
      %542 = vmatpush1.bf16.msra.mxu0 %v523
      %543 = vmatprep.subr.bf16.mxu0 0
      %544 = vmatpush1.bf16.msra.mxu0 %v522
      %545 = vmatprep.subr.bf16.mxu0 0
      %546 = vmatpush1.bf16.msra.mxu0 %v521
      %547 = vmatprep.subr.bf16.mxu0 0
      %548 = vmatpush1.bf16.msra.mxu0 %v520
      %549 = vmatprep.subr.bf16.mxu0 0
      %550 = vmatpush1.bf16.msra.mxu0 %v519
      %551 = vmatprep.subr.bf16.mxu0 0
      %552 = vmatpush2.bf16.msra.mxu0 0
      %553 = vmatprep.subr.bf16.mxu0 0
      %554 = vmatpush2.bf16.msra.mxu0 0
      %555 = vmatprep.subr.bf16.mxu0 0
      %556 = vmatpush2.bf16.msra.mxu0 0
      %557 = vmatprep.subr.bf16.mxu0 0
      %558 = vmatpush2.bf16.msra.mxu0 0
      %559 = vmatprep.subr.bf16.mxu0 0
      %560 = vmatpush2.bf16.msra.mxu0 0
      %561 = vmatprep.subr.bf16.mxu0 0
      %562 = vmatpush2.bf16.msra.mxu0 0
      %563 = vmatprep.subr.bf16.mxu0 0
      %564 = vmatpush2.bf16.msra.mxu0 0
      %565 = vmatprep.subr.bf16.mxu0 0
      %566 = vmatpush2.bf16.msra.mxu0 0
      %567 = vmatprep.mubr.bf16.mxu0 0
      %568 = vmatmul.mubr.bf16.gmra.mxu0 %v451
      %v569 = vpop.f32.mrf.mxu0
      %v570 = vadd.f32 0.0, %v569
      %v571 = vpop.f32.mrf.mxu0
      %v572 = vpop.f32.mrf.mxu0
      %v573 = vadd.f32 0.0, %v572
      %v574 = vpop.f32.mrf.mxu0
      %575 = vmatprep.mubr.bf16.mxu0 0
      %576 = vmatmul.mubr.bf16.gmra.mxu0 %v452
      %v577 = vpop.f32.mrf.mxu0
      %v578 = vadd.f32 0.0, %v577
      %v579 = vpop.f32.mrf.mxu0
      %v580 = vpop.f32.mrf.mxu0
      %v581 = vadd.f32 0.0, %v580
      %v582 = vpop.f32.mrf.mxu0
      %583 = vmatprep.mubr.bf16.mxu0 0
      %584 = vmatmul.mubr.bf16.gmra.mxu0 %v453
      %v585 = vpop.f32.mrf.mxu0
      %v586 = vadd.f32 0.0, %v585
      %v587 = vpop.f32.mrf.mxu0
      %v588 = vpop.f32.mrf.mxu0
      %v589 = vadd.f32 0.0, %v588
      %v590 = vpop.f32.mrf.mxu0
      %591 = vmatprep.mubr.bf16.mxu0 0
      %592 = vmatmul.mubr.bf16.gmra.mxu0 %v454
      %v593 = vpop.f32.mrf.mxu0
      %v594 = vadd.f32 0.0, %v593
      %v595 = vpop.f32.mrf.mxu0
      %v596 = vpop.f32.mrf.mxu0
      %v597 = vadd.f32 0.0, %v596
      %v598 = vpop.f32.mrf.mxu0
      %599 = vdwg.mxu0
      %v616 = vunpack.c.l.b16 %v455
      %v617 = vunpack.c.l.b16 %v456
      %v618 = vunpack.c.l.b16 %v457
      %v619 = vunpack.c.l.b16 %v458
      %v620 = vunpack.c.l.b16 %v459
      %v621 = vunpack.c.l.b16 %v460
      %v622 = vunpack.c.l.b16 %v461
      %v623 = vunpack.c.l.b16 %v462
      %v624 = vunpack.c.l.b16 %v463
      %v625 = vunpack.c.l.b16 %v464
      %v626 = vunpack.c.l.b16 %v465
      %v627 = vunpack.c.l.b16 %v466
      %v628 = vunpack.c.l.b16 %v467
      %v629 = vunpack.c.l.b16 %v468
      %v630 = vunpack.c.l.b16 %v469
      %v631 = vunpack.c.l.b16 %v470
      %v632 = vpack.c.b16 %v617, %v616
      %v633 = vpack.c.b16 %v619, %v618
      %v634 = vpack.c.b16 %v621, %v620
      %v635 = vpack.c.b16 %v623, %v622
      %v636 = vpack.c.b16 %v625, %v624
      %v637 = vpack.c.b16 %v627, %v626
      %v638 = vpack.c.b16 %v629, %v628
      %v639 = vpack.c.b16 %v631, %v630
      %648 = vmatprep.subr.bf16.mxu0 0
      %649 = vmatpush1.bf16.msra.mxu0 %v639
      %650 = vmatprep.subr.bf16.mxu0 0
      %651 = vmatpush1.bf16.msra.mxu0 %v638
      %652 = vmatprep.subr.bf16.mxu0 0
      %653 = vmatpush1.bf16.msra.mxu0 %v637
      %654 = vmatprep.subr.bf16.mxu0 0
      %655 = vmatpush1.bf16.msra.mxu0 %v636
      %656 = vmatprep.subr.bf16.mxu0 0
      %657 = vmatpush1.bf16.msra.mxu0 %v635
      %658 = vmatprep.subr.bf16.mxu0 0
      %659 = vmatpush1.bf16.msra.mxu0 %v634
      %660 = vmatprep.subr.bf16.mxu0 0
      %661 = vmatpush1.bf16.msra.mxu0 %v633
      %662 = vmatprep.subr.bf16.mxu0 0
      %663 = vmatpush1.bf16.msra.mxu0 %v632
      %664 = vmatprep.subr.bf16.mxu0 0
      %665 = vmatpush2.bf16.msra.mxu0 0
      %666 = vmatprep.subr.bf16.mxu0 0
      %667 = vmatpush2.bf16.msra.mxu0 0
      %668 = vmatprep.subr.bf16.mxu0 0
      %669 = vmatpush2.bf16.msra.mxu0 0
      %670 = vmatprep.subr.bf16.mxu0 0
      %671 = vmatpush2.bf16.msra.mxu0 0
      %672 = vmatprep.subr.bf16.mxu0 0
      %673 = vmatpush2.bf16.msra.mxu0 0
      %674 = vmatprep.subr.bf16.mxu0 0
      %675 = vmatpush2.bf16.msra.mxu0 0
      %676 = vmatprep.subr.bf16.mxu0 0
      %677 = vmatpush2.bf16.msra.mxu0 0
      %678 = vmatprep.subr.bf16.mxu0 0
      %679 = vmatpush2.bf16.msra.mxu0 0
      %680 = vmatprep.mubr.bf16.mxu0 0
      %681 = vmatmul.mubr.bf16.gmra.mxu0 %v451
      %v682 = vpop.f32.mrf.mxu0
      %v683 = vadd.f32 %v570, %v682
      %v684 = vpop.f32.mrf.mxu0
      %v685 = vpop.f32.mrf.mxu0
      %v686 = vadd.f32 %v573, %v685
      %v687 = vpop.f32.mrf.mxu0
      %688 = vmatprep.mubr.bf16.mxu0 0
      %689 = vmatmul.mubr.bf16.gmra.mxu0 %v452
      %v690 = vpop.f32.mrf.mxu0
      %v691 = vadd.f32 %v578, %v690
      %v692 = vpop.f32.mrf.mxu0
      %v693 = vpop.f32.mrf.mxu0
      %v694 = vadd.f32 %v581, %v693
      %v695 = vpop.f32.mrf.mxu0
      %696 = vmatprep.mubr.bf16.mxu0 0
      %697 = vmatmul.mubr.bf16.gmra.mxu0 %v453
      %v698 = vpop.f32.mrf.mxu0
      %v699 = vadd.f32 %v586, %v698
      %v700 = vpop.f32.mrf.mxu0
      %v701 = vpop.f32.mrf.mxu0
      %v702 = vadd.f32 %v589, %v701
      %v703 = vpop.f32.mrf.mxu0
      %704 = vmatprep.mubr.bf16.mxu0 0
      %705 = vmatmul.mubr.bf16.gmra.mxu0 %v454
      %v706 = vpop.f32.mrf.mxu0
      %v707 = vadd.f32 %v594, %v706
      %v708 = vpop.f32.mrf.mxu0
      %v709 = vpop.f32.mrf.mxu0
      %v710 = vadd.f32 %v597, %v709
      %v711 = vpop.f32.mrf.mxu0
      %712 = vdwg.mxu0
      %v713 = vld [vmem:[%s324] sm:$0xff]
      %v714 = vld [vmem:[%s324 + $0x8] sm:$0xff]
      %v715 = vld [vmem:[%s324 + $0x10] sm:$0xff]
      %v716 = vld [vmem:[%s324 + $0x18] sm:$0xff]
      %v717 = vld [vmem:[%s324 + $0x20] sm:$0xff]
      %v718 = vld [vmem:[%s324 + $0x28] sm:$0xff]
      %v719 = vld [vmem:[%s324 + $0x30] sm:$0xff]
      %v720 = vld [vmem:[%s324 + $0x38] sm:$0xff]
      %v721 = vadd.f32 %v713, %v683
      %v722 = vadd.f32 %v714, %v686
      %v723 = vadd.f32 %v715, %v691
      %v724 = vadd.f32 %v716, %v694
      %v725 = vadd.f32 %v717, %v699
      %v726 = vadd.f32 %v718, %v702
      %v727 = vadd.f32 %v719, %v707
      %v728 = vadd.f32 %v720, %v710
      %vm729 = vcmask 261120
      %730 = vst.msk [vmem:[%s334] sm:$0xff] %vm729, %v721
      %731 = vst.msk [vmem:[%s334 + $0x8] sm:$0xff] %vm729, %v722
      %732 = vst.msk [vmem:[%s334 + $0x10] sm:$0xff] %vm729, %v723
      %733 = vst.msk [vmem:[%s334 + $0x18] sm:$0xff] %vm729, %v724
      %734 = vst.msk [vmem:[%s334 + $0x20] sm:$0xff] %vm729, %v725
      %735 = vst.msk [vmem:[%s334 + $0x28] sm:$0xff] %vm729, %v726
      %736 = vst.msk [vmem:[%s334 + $0x30] sm:$0xff] %vm729, %v727
      %737 = vst.msk [vmem:[%s334 + $0x38] sm:$0xff] %vm729, %v728
      %s738 = smul.u32 8, %s20
      %p739 = scmp.lt.s32.totalorder %s21, 1
      %s740 = scalar_select %p739, %s21, 1
      %p741 = scmp.lt.s32.totalorder %s738, 7
      %s742 = scalar_select %p741, %s738, 7
      %s743 = smul.addr %s740, 8
      %s744 = sadd.s32 %s742, %s743
      %s745 = smul.addr %s744, 8
      %s746 = scalar_lea.vmem %s5, %s745
      // Predicated region
      $region41: #{positional_encoding_2d.1} parent=39 // pred_check
        %p747 = pneg %p174
      $region42: #{positional_encoding_2d.1} parent=39 // pred_check_branch
        %749 = sbr.rel (%p747) target = $region44
      $region43: #{positional_encoding_2d.1} parent=39 // pred_region
        %s750 = smul.u32 8, %s20
      $region44: #{positional_encoding_2d.1} parent=39 // pred_fallthru
        _
    $region40: #{positional_encoding_2d.1} parent=5 // pred_fallthru
      _
    %p751 = scmp.le.s32.totalorder 2, %s11
    // Predicated region
    $region45: #{positional_encoding_2d.1} parent=5 // pred_check
      %p752 = pneg %p751
    $region46: #{positional_encoding_2d.1} parent=5 // pred_check_branch
      %754 = sbr.rel (%p752) target = $region48
    $region47: #{positional_encoding_2d.1} parent=5 // pred_region
      %s755 = ssub.s32 %s11, 2
      // Predicated region
      $region49: #{positional_encoding_2d.1} parent=47 // pred_check
        %p756 = pneg %p180
      $region50: #{positional_encoding_2d.1} parent=47 // pred_check_branch
        %758 = sbr.rel (%p756) target = $region52
      $region51: #{positional_encoding_2d.1} parent=47 // pred_region
        %s759 = smul.u32 8, %s22
        %p760 = scmp.lt.s32.totalorder %s23, 1
        %s761 = scalar_select %p760, %s23, 1
        %p762 = scmp.lt.s32.totalorder %s759, 7
        %s763 = scalar_select %p762, %s759, 7
        %s764 = smul.addr %s761, 8
        %s765 = sadd.s32 %s763, %s764
        %s766 = smul.addr %s765, 8
        %s767 = scalar_lea.vmem %s5, %s766
      $region52: #{positional_encoding_2d.1} parent=47 // pred_fallthru
        _
    $region48: #{positional_encoding_2d.1} parent=5 // pred_fallthru
      _
  $region6: #{positional_encoding_2d.1} parent=0 // loop_footer
    %s15 = sadd.s32 1, %s11
  $region7: #{positional_encoding_2d.1} parent=0 // loop_footer_branch
    %10 = sbr.rel target = $region3
  $region8: #{positional_encoding_2d.1} parent=0 // loop_exit
    _

</llo_original>
